<compile_context>
chip_gen: v5e
topology: v5e:2x2
jax: 0.10.0
libtpu: 0.0.40
codegen_flags: <defaults>
</compile_context>

<pallas_src>
import jax
import jax.numpy as jnp
from jax.experimental import pallas as pl
from jax.experimental.pallas import tpu as pltpu

HIDDEN = 128   # per-tower hidden width
OUT = 64       # per-tower output width


def _fused_two_tower_kernel(x_ref, w1_ref, b1_ref, w2_ref, b2_ref, o_ref):
    """One batch tile of the fused two-tower MLP.

    x_ref  : (TB, E_u + E_i)        concatenated user|item embeddings
    w1_ref : (E_u + E_i, 2*HIDDEN)  block-diag [W1_user, W1_item]
    b1_ref : (1, 2*HIDDEN)
    w2_ref : (2*HIDDEN, 2*OUT)      block-diag [W2_user, W2_item]
    b2_ref : (1, 2*OUT)
    o_ref  : (TB, 2*OUT)            user vector in lanes [:OUT], item vector in [OUT:]
    """
    x = x_ref[...]
    h = jnp.dot(x, w1_ref[...], preferred_element_type=jnp.float32) + b1_ref[...]
    h = jnp.maximum(h, 0.0)                  # ReLU on the VPU
    h = h.astype(w2_ref.dtype)               # feed the MXU in the storage dtype
    y = jnp.dot(h, w2_ref[...], preferred_element_type=jnp.float32) + b2_ref[...]
    o_ref[...] = y.astype(o_ref.dtype)
    # Dropout(0.5) == identity in eval mode.


def _round_up(x, m):
    return ((x + m - 1) // m) * m


def _fuse_tower_params(user_params, item_params, dtype):
    """Pack the two towers' Linear weights into block-diagonal fused matrices."""
    w1_u, b1_u, w2_u, b2_u = user_params
    w1_i, b1_i, w2_i, b2_i = item_params
    e_u, e_i = w1_u.shape[0], w1_i.shape[0]
    W1 = jnp.zeros((e_u + e_i, 2 * HIDDEN), dtype)
    W1 = W1.at[:e_u, :HIDDEN].set(w1_u.astype(dtype)).at[e_u:, HIDDEN:].set(w1_i.astype(dtype))
    b1 = jnp.concatenate([b1_u, b1_i], axis=1).astype(dtype)
    W2 = jnp.zeros((2 * HIDDEN, 2 * OUT), dtype)
    W2 = W2.at[:HIDDEN, :OUT].set(w2_u.astype(dtype)).at[HIDDEN:, OUT:].set(w2_i.astype(dtype))
    b2 = jnp.concatenate([b2_u, b2_i], axis=1).astype(dtype)
    return W1, b1, W2, b2


def fused_two_tower(x_cat, W1, b1, W2, b2, *, batch_tile):
    """Single pallas_call over batch tiles; weights stay resident across tiles."""
    B, E = x_cat.shape
    return pl.pallas_call(
        _fused_two_tower_kernel,
        out_shape=jax.ShapeDtypeStruct((B, 2 * OUT), jnp.float32),
        grid=(B // batch_tile,),
        in_specs=[
            pl.BlockSpec((batch_tile, E), lambda i: (i, 0)),
            # Constant block index -> W/b are DMA'd once and stay VMEM-resident.
            pl.BlockSpec((E, 2 * HIDDEN), lambda i: (0, 0)),
            pl.BlockSpec((1, 2 * HIDDEN), lambda i: (0, 0)),
            pl.BlockSpec((2 * HIDDEN, 2 * OUT), lambda i: (0, 0)),
            pl.BlockSpec((1, 2 * OUT), lambda i: (0, 0)),
        ],
        out_specs=pl.BlockSpec((batch_tile, 2 * OUT), lambda i: (i, 0)),
        compiler_params=pltpu.CompilerParams(
            dimension_semantics=("parallel",)),   # shard batch tiles across v7x's 2 TCs
    )(x_cat, W1, b1, W2, b2)


def init_tower_params(key, embedding_dim, hidden=HIDDEN, out=OUT):
    """Deterministic init mimicking PyTorch Linear default (uniform +-1/sqrt(fan_in)).
    Weights stored as [in_features, out_features] so the kernel computes y = x @ W + b."""
    k1, k2, k3, k4 = jax.random.split(key, 4)
    lim1 = 1.0 / jnp.sqrt(embedding_dim)
    lim2 = 1.0 / jnp.sqrt(hidden)
    w1 = jax.random.uniform(k1, (embedding_dim, hidden), jnp.float32, -lim1, lim1)
    b1 = jax.random.uniform(k2, (1, hidden), jnp.float32, -lim1, lim1)
    w2 = jax.random.uniform(k3, (hidden, out), jnp.float32, -lim2, lim2)
    b2 = jax.random.uniform(k4, (1, out), jnp.float32, -lim2, lim2)
    return w1, b1, w2, b2


def two_tower_forward(user_embedding, item_embedding, user_params, item_params,
                      *, batch_tile=128, compute_dtype=jnp.float32):
    """Matches TwoTowerModel.forward: slice to min batch, run both towers (fused into one
    Pallas call), return (item_vector, user_vector)."""
    min_b = min(user_embedding.shape[0], item_embedding.shape[0])
    u = user_embedding[:min_b].astype(compute_dtype)
    it = item_embedding[:min_b].astype(compute_dtype)
    x_cat = jnp.concatenate([u, it], axis=1)              # (min_b, E_u + E_i)

    W1, b1, W2, b2 = _fuse_tower_params(user_params, item_params, compute_dtype)

    # Pad batch to a sublane-friendly tile (>=8 rows); large batches tile at `batch_tile`.
    tb = batch_tile if min_b >= batch_tile else _round_up(min_b, 8)
    b_pad = _round_up(min_b, tb)
    if b_pad != min_b:
        x_cat = jnp.pad(x_cat, ((0, b_pad - min_b), (0, 0)))

    out = fused_two_tower(x_cat, W1, b1, W2, b2, batch_tile=tb)[:min_b]
    user_vector = out[:, :OUT]
    item_vector = out[:, OUT:]
    return item_vector, user_vector


if __name__ == "__main__":
    key = jax.random.PRNGKey(0)
    k_u, k_i, k_up, k_ip = jax.random.split(key, 4)

    user_embedding_dim = 32
    item_embedding_dim = 16
    user_batch, item_batch = 4, 2   # min batch = 2

    user_embedding = jax.random.normal(k_u, (user_batch, user_embedding_dim), jnp.float32)
    item_embedding = jax.random.normal(k_i, (item_batch, item_embedding_dim), jnp.float32)

    user_params = init_tower_params(k_up, user_embedding_dim)
    item_params = init_tower_params(k_ip, item_embedding_dim)

    item_vec, user_vec = two_tower_forward(user_embedding, item_embedding,
                                           user_params, item_params)
    jax.block_until_ready((item_vec, user_vec))

    # sanity: shapes match PyTorch semantics ((min_b, 64) each)
    assert item_vec.shape == (2, OUT) and user_vec.shape == (2, OUT)

    # reference check in plain JAX (eval-mode dropout == identity)
    def ref_tower(x, w1, b1, w2, b2):
        return jnp.maximum(x @ w1 + b1, 0.0) @ w2 + b2

    ref_user = ref_tower(user_embedding[:2], *user_params)
    ref_item = ref_tower(item_embedding[:2], *item_params)
    assert jnp.allclose(user_vec, ref_user, atol=1e-5)
    assert jnp.allclose(item_vec, ref_item, atol=1e-5)

    print("KERNEL_OK")
</pallas_src>

<mosaic_0001>
module attributes {stable_mosaic.version = 11 : i64} {
  func.func @_fused_two_tower_kernel(%arg0: i32, %arg1: memref<8x48xf32, #tpu.memory_space<vmem>>, %arg2: memref<48x256xf32, #tpu.memory_space<vmem>>, %arg3: memref<1x256xf32, #tpu.memory_space<vmem>>, %arg4: memref<256x128xf32, #tpu.memory_space<vmem>>, %arg5: memref<1x128xf32, #tpu.memory_space<vmem>>, %arg6: memref<8x128xf32, #tpu.memory_space<vmem>>) attributes {dimension_semantics = [#tpu.dimension_semantics<parallel>], iteration_bounds = array<i64: 1>, scalar_prefetch = 0 : i64, scratch_operands = 0 : i64, tpu.core_type = #tpu.core_type<tc>, window_params = [{transform_indices = @transform_0, window_bounds = array<i64: 8, 48>}, {pipeline_mode = #tpu.pipeline_mode<synchronous>, transform_indices = @transform_1, window_bounds = array<i64: 48, 256>}, {pipeline_mode = #tpu.pipeline_mode<synchronous>, transform_indices = @transform_2, window_bounds = array<i64: 1, 256>}, {pipeline_mode = #tpu.pipeline_mode<synchronous>, transform_indices = @transform_3, window_bounds = array<i64: 256, 128>}, {pipeline_mode = #tpu.pipeline_mode<synchronous>, transform_indices = @transform_4, window_bounds = array<i64: 1, 128>}, {transform_indices = @transform_5, window_bounds = array<i64: 8, 128>}]} {
    %c0 = arith.constant 0 : index
    %c0_0 = arith.constant 0 : index
    %0 = vector.load %arg1[%c0, %c0_0] : memref<8x48xf32, #tpu.memory_space<vmem>>, vector<8x48xf32>
    %c0_1 = arith.constant 0 : index
    %c0_2 = arith.constant 0 : index
    %1 = vector.load %arg2[%c0_1, %c0_2] : memref<48x256xf32, #tpu.memory_space<vmem>>, vector<48x256xf32>
    %cst = arith.constant dense<0.000000e+00> : vector<8x256xf32>
    %2 = tpu.matmul %0, %1, %cst {dimension_numbers = #tpu.dot_dimension_numbers<[1], [0], [0], [1], [0, 0, 1, 1], [], []>} : vector<8x48xf32>, vector<48x256xf32>, vector<8x256xf32> -> vector<8x256xf32>
    %c0_3 = arith.constant 0 : index
    %c0_4 = arith.constant 0 : index
    %3 = vector.load %arg3[%c0_3, %c0_4] : memref<1x256xf32, #tpu.memory_space<vmem>>, vector<1x256xf32>
    %4 = vector.broadcast %3 : vector<1x256xf32> to vector<8x256xf32>
    %5 = arith.addf %2, %4 : vector<8x256xf32>
    %cst_5 = arith.constant 0.000000e+00 : f32
    %6 = vector.broadcast %cst_5 : f32 to vector<8x256xf32>
    %7 = arith.maximumf %5, %6 : vector<8x256xf32>
    %c0_6 = arith.constant 0 : index
    %c0_7 = arith.constant 0 : index
    %8 = vector.load %arg4[%c0_6, %c0_7] : memref<256x128xf32, #tpu.memory_space<vmem>>, vector<256x128xf32>
    %cst_8 = arith.constant dense<0.000000e+00> : vector<8x128xf32>
    %9 = tpu.matmul %7, %8, %cst_8 {dimension_numbers = #tpu.dot_dimension_numbers<[1], [0], [0], [1], [0, 0, 1, 1], [], []>} : vector<8x256xf32>, vector<256x128xf32>, vector<8x128xf32> -> vector<8x128xf32>
    %c0_9 = arith.constant 0 : index
    %c0_10 = arith.constant 0 : index
    %10 = vector.load %arg5[%c0_9, %c0_10] : memref<1x128xf32, #tpu.memory_space<vmem>>, vector<1x128xf32>
    %11 = vector.broadcast %10 : vector<1x128xf32> to vector<8x128xf32>
    %12 = arith.addf %9, %11 : vector<8x128xf32>
    %c0_11 = arith.constant 0 : index
    %c0_12 = arith.constant 0 : index
    %13 = vector.load %arg6[%c0_11, %c0_12] : memref<8x128xf32, #tpu.memory_space<vmem>>, vector<8x128xf32>
    tpu.vector_store %arg6[%c0_11, %c0_12], %12 {strides = array<i32>} : memref<8x128xf32, #tpu.memory_space<vmem>>, vector<8x128xf32>,
    return
  }
  func.func @transform_0(%arg0: i32) -> (i32, i32) {
    %c0_i32 = arith.constant 0 : i32
    %c0_i32_0 = arith.constant 0 : i32
    return %arg0, %c0_i32 : i32, i32
  }
  func.func @transform_1(%arg0: i32) -> (i32, i32) {
    %c0_i32 = arith.constant 0 : i32
    %c0_i32_0 = arith.constant 0 : i32
    %c0_i32_1 = arith.constant 0 : i32
    return %c0_i32, %c0_i32_0 : i32, i32
  }
  func.func @transform_2(%arg0: i32) -> (i32, i32) {
    %c0_i32 = arith.constant 0 : i32
    %c0_i32_0 = arith.constant 0 : i32
    %c0_i32_1 = arith.constant 0 : i32
    return %c0_i32, %c0_i32_0 : i32, i32
  }
  func.func @transform_3(%arg0: i32) -> (i32, i32) {
    %c0_i32 = arith.constant 0 : i32
    %c0_i32_0 = arith.constant 0 : i32
    %c0_i32_1 = arith.constant 0 : i32
    return %c0_i32, %c0_i32_0 : i32, i32
  }
  func.func @transform_4(%arg0: i32) -> (i32, i32) {
    %c0_i32 = arith.constant 0 : i32
    %c0_i32_0 = arith.constant 0 : i32
    %c0_i32_1 = arith.constant 0 : i32
    return %c0_i32, %c0_i32_0 : i32, i32
  }
  func.func @transform_5(%arg0: i32) -> (i32, i32) {
    %c0_i32 = arith.constant 0 : i32
    %c0_i32_0 = arith.constant 0 : i32
    return %arg0, %c0_i32 : i32, i32
  }
}

</mosaic_0001>

<llo_original>
// kernel: tpu_custom_call.1
$region0: #{tpu_custom_call.1}
  #allocation0 [shape = 'u32[]', space=smem, size = 0x4, offset = 0x4, fixed_abs, tag = 'smem constant byte address 0x4 - core index']
  #allocation1 [shape = 'u32[72,128]{1,0:T(1,128)}', space=vmem, size = 0x9000, scoped, tag = 'internal scratch']
  %s0 = inlined_call_operand.hbm [shape: f32[8,48], index: 0, kind: input, shape index: {}]
  %s1 = inlined_call_operand.hbm [shape: f32[48,256], index: 1, kind: input, shape index: {}]
  %s2 = inlined_call_operand.hbm [shape: f32[1,256], index: 2, kind: input, shape index: {}]
  %s3 = inlined_call_operand.hbm [shape: f32[256,128], index: 3, kind: input, shape index: {}]
  %s4 = inlined_call_operand.vmem [shape: f32[1,128], index: 4, kind: input, shape index: {}]
  %s5 = inlined_call_operand.hbm [shape: f32[8,128], index: 5, kind: output, shape index: {}]
  %s6 = sld [smem:[#allocation0]]
  $region46: #{tpu_custom_call.1} parent=0
    _
  %s8 = ssub.s32 1, %s6
  %s9 = scalar_select 0, %s8, %s6
  $region1: #{tpu_custom_call.1} parent=0
    #allocation2 [shape = 'u8[4096]{0}', space=vmem, size = 0x1000, scoped, tag = 'input window, operand 0, single buffered']
    #allocation3 [shape = 's32[1]{0}', space=sflag, size = 0x4, scoped, tag = 'scoped memory for tpu_custom_call.1']
    #allocation4 [shape = 's32[1]{0}', space=sflag, size = 0x4, scoped, tag = 'scoped memory for tpu_custom_call.1']
    #allocation5 [shape = 'u8[49152]{0}', space=vmem, size = 0xc000, scoped, tag = 'input window, operand 1, single buffered']
    #allocation6 [shape = 's32[1]{0}', space=sflag, size = 0x4, scoped, tag = 'scoped memory for tpu_custom_call.1']
    #allocation7 [shape = 'u8[1024]{0}', space=vmem, size = 0x400, scoped, tag = 'input window, operand 2, single buffered']
    #allocation8 [shape = 'u8[131072]{0}', space=vmem, size = 0x20000, scoped, tag = 'input window, operand 3, single buffered']
    #allocation9 [shape = 's32[1]{0}', space=sflag, size = 0x4, scoped, tag = 'scoped memory for tpu_custom_call.1']
    #allocation10 [shape = 'u8[4096]{0}', space=vmem, size = 0x1000, scoped, tag = 'output window, operand 0, single buffered']
    %10 = vsyncpa [#allocation3], 0
    %11 = vsyncpa [#allocation6], 0
    %12 = vsyncpa [#allocation9], 0
    %13 = vsyncpa [#allocation4], 0
    // Predicated region
    $region2: #{tpu_custom_call.1} parent=1 // pred_check
      _
    $region3: #{tpu_custom_call.1} parent=1 // pred_check_branch
      %15 = sbr.rel (0) target = $region5
    $region4: #{tpu_custom_call.1} parent=1 // pred_region
      %17 = vsyncadd [#allocation3], 0
      %s19 = sshll.u32 %s0, 4
      %s20 = int_to_ptr.hbm [resolvable:$true] %s19
      %s21 = sshll.u32 [#allocation2], 4
      %s22 = int_to_ptr.vmem [resolvable:$true] %s21
      %24 = dma.hbm_to_vmem [thread:$0]  %s20, 128, %s22, [#allocation3]
    $region5: #{tpu_custom_call.1} parent=1 // pred_fallthru
      _
    // Predicated region
    $region6: #{tpu_custom_call.1} parent=1 // pred_check
      _
    $region7: #{tpu_custom_call.1} parent=1 // pred_check_branch
      %26 = sbr.rel (0) target = $region9
    $region8: #{tpu_custom_call.1} parent=1 // pred_region
      %28 = vsyncadd [#allocation6], 0
      %s29 = sshll.u32 %s1, 4
      %s30 = int_to_ptr.hbm [resolvable:$true] %s29
      %s31 = sshll.u32 [#allocation5], 4
      %s32 = int_to_ptr.vmem [resolvable:$true] %s31
      %37 = dma.hbm_to_vmem [thread:$0]  %s30, 1536, %s32, [#allocation6], 256, 256, 16
    $region9: #{tpu_custom_call.1} parent=1 // pred_fallthru
      _
    // Predicated region
    $region10: #{tpu_custom_call.1} parent=1 // pred_check
      _
    $region11: #{tpu_custom_call.1} parent=1 // pred_check_branch
      %39 = sbr.rel (0) target = $region13
    $region12: #{tpu_custom_call.1} parent=1 // pred_region
      %41 = vsyncadd [#allocation6], 0
      %s43 = sshll.u32 %s2, 4
      %s44 = int_to_ptr.hbm [resolvable:$true] %s43
      %s45 = sshll.u32 [#allocation7], 4
      %s46 = int_to_ptr.vmem [resolvable:$true] %s45
      %48 = dma.hbm_to_vmem [thread:$0]  %s44, 32, %s46, [#allocation6]
    $region13: #{tpu_custom_call.1} parent=1 // pred_fallthru
      _
    // Predicated region
    $region14: #{tpu_custom_call.1} parent=1 // pred_check
      _
    $region15: #{tpu_custom_call.1} parent=1 // pred_check_branch
      %50 = sbr.rel (0) target = $region17
    $region16: #{tpu_custom_call.1} parent=1 // pred_region
      %52 = vsyncadd [#allocation9], 0
      %s53 = sshll.u32 %s3, 4
      %s54 = int_to_ptr.hbm [resolvable:$true] %s53
      %s55 = sshll.u32 [#allocation8], 4
      %s56 = int_to_ptr.vmem [resolvable:$true] %s55
      %61 = dma.hbm_to_vmem [thread:$0]  %s54, 4096, %s56, [#allocation9], 128, 128, 8
    $region17: #{tpu_custom_call.1} parent=1 // pred_fallthru
      _
    // Predicated region
    $region18: #{tpu_custom_call.1} parent=1 // pred_check
      _
    $region19: #{tpu_custom_call.1} parent=1 // pred_check_branch
      %63 = sbr.rel (0) target = $region21
    $region20: #{tpu_custom_call.1} parent=1 // pred_region
      _
    $region21: #{tpu_custom_call.1} parent=1 // pred_fallthru
      _
    // Predicated region
    $region22: #{tpu_custom_call.1} parent=1 // pred_check
      _
    $region23: #{tpu_custom_call.1} parent=1 // pred_check_branch
      %65 = sbr.rel (0) target = $region25
    $region24: #{tpu_custom_call.1} parent=1 // pred_region
      %67 = dma.done [#allocation3], 128
    $region25: #{tpu_custom_call.1} parent=1 // pred_fallthru
      _
    // Predicated region
    $region26: #{tpu_custom_call.1} parent=1 // pred_check
      _
    $region27: #{tpu_custom_call.1} parent=1 // pred_check_branch
      %69 = sbr.rel (0) target = $region29
    $region28: #{tpu_custom_call.1} parent=1 // pred_region
      %71 = dma.done [#allocation6], 1536
    $region29: #{tpu_custom_call.1} parent=1 // pred_fallthru
      _
    // Predicated region
    $region30: #{tpu_custom_call.1} parent=1 // pred_check
      _
    $region31: #{tpu_custom_call.1} parent=1 // pred_check_branch
      %73 = sbr.rel (0) target = $region33
    $region32: #{tpu_custom_call.1} parent=1 // pred_region
      %75 = dma.done [#allocation6], 32
    $region33: #{tpu_custom_call.1} parent=1 // pred_fallthru
      _
    // Predicated region
    $region34: #{tpu_custom_call.1} parent=1 // pred_check
      _
    $region35: #{tpu_custom_call.1} parent=1 // pred_check_branch
      %77 = sbr.rel (0) target = $region37
    $region36: #{tpu_custom_call.1} parent=1 // pred_region
      %79 = dma.done [#allocation9], 4096
    $region37: #{tpu_custom_call.1} parent=1 // pred_fallthru
      _
    %v80 = vld [vmem:[#allocation2] sm:$0xff]
    %v81 = vld [vmem:[#allocation5] sm:$0xff]
    %v82 = vld [vmem:[#allocation5 + $0x8] sm:$0xff]
    %v83 = vld [vmem:[#allocation5 + $0x10] sm:$0xff]
    %v84 = vld [vmem:[#allocation5 + $0x18] sm:$0xff]
    %v85 = vld [vmem:[#allocation5 + $0x20] sm:$0xff]
    %v86 = vld [vmem:[#allocation5 + $0x28] sm:$0xff]
    %v87 = vld [vmem:[#allocation5 + $0x30] sm:$0xff]
    %v88 = vld [vmem:[#allocation5 + $0x38] sm:$0xff]
    %v89 = vld [vmem:[#allocation5 + $0x40] sm:$0xff]
    %v90 = vld [vmem:[#allocation5 + $0x48] sm:$0xff]
    %v91 = vld [vmem:[#allocation5 + $0x50] sm:$0xff]
    %v92 = vld [vmem:[#allocation5 + $0x58] sm:$0xff]
    %v93 = vld [vmem:[#allocation7] sm:$0x3]
    %v95 = vperm.slane %v93, 0
    %v96 = vperm.slane %v93, 1
    %vm99 = vcmask 392192
    %v101 = vsel %vm99, %v80, 0
    %103 = vmatpush.msra.mxu0 0.0
    %104 = vmatpush.msra.mxu0 0.0
    %105 = vmatpush.msra.mxu0 0.0
    %106 = vmatpush.msra.mxu0 0.0
    %107 = vmatpush.msra.mxu0 0.0
    %108 = vmatpush.msra.mxu0 0.0
    %109 = vmatpush.msra.mxu0 0.0
    %110 = vmatpush.msra.mxu0 0.0
    %111 = vmatpush.msra.mxu0 0.0
    %112 = vmatpush.msra.mxu0 0.0
    %113 = vmatpush.msra.mxu0 %v91
    %114 = vmatpush.msra.mxu0 %v89
    %115 = vmatpush.msra.mxu0 %v87
    %116 = vmatpush.msra.mxu0 %v85
    %117 = vmatpush.msra.mxu0 %v83
    %118 = vmatpush.msra.mxu0 %v81
    %119 = vmatmul.f32.gmra.mxu0 %v101
    %v120 = vpop.f32.mrf.mxu0
    %v121 = vadd.f32 %v95, %v120
    %122 = vdwg.mxu0
    %123 = vmatpush.msra.mxu0 0.0
    %124 = vmatpush.msra.mxu0 0.0
    %125 = vmatpush.msra.mxu0 0.0
    %126 = vmatpush.msra.mxu0 0.0
    %127 = vmatpush.msra.mxu0 0.0
    %128 = vmatpush.msra.mxu0 0.0
    %129 = vmatpush.msra.mxu0 0.0
    %130 = vmatpush.msra.mxu0 0.0
    %131 = vmatpush.msra.mxu0 0.0
    %132 = vmatpush.msra.mxu0 0.0
    %133 = vmatpush.msra.mxu0 %v92
    %134 = vmatpush.msra.mxu0 %v90
    %135 = vmatpush.msra.mxu0 %v88
    %136 = vmatpush.msra.mxu0 %v86
    %137 = vmatpush.msra.mxu0 %v84
    %138 = vmatpush.msra.mxu0 %v82
    %139 = vmatmul.f32.gmra.mxu0 %v101
    %v140 = vpop.f32.mrf.mxu0
    %v141 = vadd.f32 %v96, %v140
    %142 = vdwg.mxu0
    %v143 = vmax.f32 %v121, 0.0
    %v144 = vmax.f32 %v141, 0.0
    %v145 = vld [vmem:[#allocation8] sm:$0xff]
    %v146 = vld [vmem:[#allocation8 + $0x8] sm:$0xff]
    %v147 = vld [vmem:[#allocation8 + $0x10] sm:$0xff]
    %v148 = vld [vmem:[#allocation8 + $0x18] sm:$0xff]
    %v149 = vld [vmem:[#allocation8 + $0x20] sm:$0xff]
    %v150 = vld [vmem:[#allocation8 + $0x28] sm:$0xff]
    %v151 = vld [vmem:[#allocation8 + $0x30] sm:$0xff]
    %v152 = vld [vmem:[#allocation8 + $0x38] sm:$0xff]
    %v153 = vld [vmem:[#allocation8 + $0x40] sm:$0xff]
    %v154 = vld [vmem:[#allocation8 + $0x48] sm:$0xff]
    %v155 = vld [vmem:[#allocation8 + $0x50] sm:$0xff]
    %v156 = vld [vmem:[#allocation8 + $0x58] sm:$0xff]
    %v157 = vld [vmem:[#allocation8 + $0x60] sm:$0xff]
    %v158 = vld [vmem:[#allocation8 + $0x68] sm:$0xff]
    %v159 = vld [vmem:[#allocation8 + $0x70] sm:$0xff]
    %v160 = vld [vmem:[#allocation8 + $0x78] sm:$0xff]
    %v161 = vld [vmem:[#allocation8 + $0x80] sm:$0xff]
    %v162 = vld [vmem:[#allocation8 + $0x88] sm:$0xff]
    %v163 = vld [vmem:[#allocation8 + $0x90] sm:$0xff]
    %v164 = vld [vmem:[#allocation8 + $0x98] sm:$0xff]
    %v165 = vld [vmem:[#allocation8 + $0xa0] sm:$0xff]
    %v166 = vld [vmem:[#allocation8 + $0xa8] sm:$0xff]
    %v167 = vld [vmem:[#allocation8 + $0xb0] sm:$0xff]
    %v168 = vld [vmem:[#allocation8 + $0xb8] sm:$0xff]
    %v169 = vld [vmem:[#allocation8 + $0xc0] sm:$0xff]
    %v170 = vld [vmem:[#allocation8 + $0xc8] sm:$0xff]
    %v171 = vld [vmem:[#allocation8 + $0xd0] sm:$0xff]
    %v172 = vld [vmem:[#allocation8 + $0xd8] sm:$0xff]
    %v173 = vld [vmem:[#allocation8 + $0xe0] sm:$0xff]
    %v174 = vld [vmem:[#allocation8 + $0xe8] sm:$0xff]
    %v175 = vld [vmem:[#allocation8 + $0xf0] sm:$0xff]
    %v176 = vld [vmem:[#allocation8 + $0xf8] sm:$0xff]
    %v177 = vld [vmem:[%s4] sm:$0x1]
    %v179 = vperm.slane %v177, 0
    %181 = vmatpush.msra.mxu0 %v160
    %182 = vmatpush.msra.mxu0 %v159
    %183 = vmatpush.msra.mxu0 %v158
    %184 = vmatpush.msra.mxu0 %v157
    %185 = vmatpush.msra.mxu0 %v156
    %186 = vmatpush.msra.mxu0 %v155
    %187 = vmatpush.msra.mxu0 %v154
    %188 = vmatpush.msra.mxu0 %v153
    %189 = vmatpush.msra.mxu0 %v152
    %190 = vmatpush.msra.mxu0 %v151
    %191 = vmatpush.msra.mxu0 %v150
    %192 = vmatpush.msra.mxu0 %v149
    %193 = vmatpush.msra.mxu0 %v148
    %194 = vmatpush.msra.mxu0 %v147
    %195 = vmatpush.msra.mxu0 %v146
    %196 = vmatpush.msra.mxu0 %v145
    %197 = vmatmul.f32.gmra.mxu0 %v143
    %v198 = vpop.f32.mrf.mxu0
    %v199 = vadd.f32 %v179, %v198
    %200 = vdwg.mxu0
    %201 = vmatpush.msra.mxu0 %v176
    %202 = vmatpush.msra.mxu0 %v175
    %203 = vmatpush.msra.mxu0 %v174
    %204 = vmatpush.msra.mxu0 %v173
    %205 = vmatpush.msra.mxu0 %v172
    %206 = vmatpush.msra.mxu0 %v171
    %207 = vmatpush.msra.mxu0 %v170
    %208 = vmatpush.msra.mxu0 %v169
    %209 = vmatpush.msra.mxu0 %v168
    %210 = vmatpush.msra.mxu0 %v167
    %211 = vmatpush.msra.mxu0 %v166
    %212 = vmatpush.msra.mxu0 %v165
    %213 = vmatpush.msra.mxu0 %v164
    %214 = vmatpush.msra.mxu0 %v163
    %215 = vmatpush.msra.mxu0 %v162
    %216 = vmatpush.msra.mxu0 %v161
    %217 = vmatmul.f32.gmra.mxu0 %v144
    %v218 = vpop.f32.mrf.mxu0
    %v219 = vadd.f32 %v199, %v218
    %220 = vdwg.mxu0
    %221 = vst [vmem:[#allocation10] sm:$0xff] %v219
    // Predicated region
    $region38: #{tpu_custom_call.1} parent=1 // pred_check
      _
    $region39: #{tpu_custom_call.1} parent=1 // pred_check_branch
      %223 = sbr.rel (0) target = $region41
    $region40: #{tpu_custom_call.1} parent=1 // pred_region
      %225 = vsyncadd [#allocation4], 0
      %s227 = sshll.u32 [#allocation10], 4
      %s228 = int_to_ptr.vmem [resolvable:$true] %s227
      %s229 = sshll.u32 %s5, 4
      %s230 = int_to_ptr.hbm [resolvable:$true] %s229
      %232 = dma.vmem_to_hbm [thread:$0]  %s228, 128, %s230, [#allocation4]
    $region41: #{tpu_custom_call.1} parent=1 // pred_fallthru
      _
    // Predicated region
    $region42: #{tpu_custom_call.1} parent=1 // pred_check
      _
    $region43: #{tpu_custom_call.1} parent=1 // pred_check_branch
      %234 = sbr.rel (0) target = $region45
    $region44: #{tpu_custom_call.1} parent=1 // pred_region
      %236 = dma.done [#allocation4], 128
    $region45: #{tpu_custom_call.1} parent=1 // pred_fallthru
      _
    %237 = vsyncpa [#allocation3], 1
    %238 = vsyncpa [#allocation6], 1
    %239 = vsyncpa [#allocation9], 1
    %240 = vsyncpa [#allocation4], 1

</llo_original>
